<compile_context>
chip_gen: v6e
topology: v6e:2x2x1
jax: 0.10.0
libtpu: 0.0.40
codegen_flags: <defaults>
</compile_context>

<pallas_src>
import math
import functools

import jax
import jax.numpy as jnp
from jax import lax
from jax.experimental import pallas as pl
from jax.experimental.pallas import tpu as pltpu


# ----------------------------------------------------------------------------
# Hardware-aware sizing helpers
# ----------------------------------------------------------------------------
def _vmem_budget_bytes():
    """~75% of per-core VMEM.  Conservative 64 MiB (v7x) default if the query
    is unavailable, so sizing never assumes more memory than the smallest
    supported generation."""
    cap = 64 * 1024 * 1024
    try:
        info = pltpu.get_tpu_info()
        cap = int(getattr(info, "vmem_capacity_bytes", cap) or cap)
    except Exception:
        pass
    return int(cap) * 3 // 4


def _pick_tile(dim, prefs, cap=1024):
    """Largest preferred tile that divides `dim`; else (for big odd dims) the
    largest divisor <= cap that is a multiple of 8; else the whole dim
    (always legal)."""
    for t in prefs:
        if dim % t == 0:
            return t
    if dim > cap:
        for t in range(cap, 7, -1):
            if dim % t == 0 and t % 8 == 0:
                return t
    return dim


def _attn_query_tile(Lq, Lk, d_model, nhead, io_bytes, attn_bytes, budget):
    """Largest query tile whose double-buffered residents + f32 temporaries fit
    the VMEM budget (keeps the pipeline double-buffered on v7x's 64 MiB)."""
    cands = [t for t in (512, 256, 128, 64, 32, 16, 8) if Lq % t == 0] or [Lq]
    for tq in cands:
        resident = 2 * (tq * d_model * io_bytes          # Q tile
                        + 2 * Lk * d_model * io_bytes    # K + V slabs
                        + tq * d_model * io_bytes        # context tile
                        + nhead * tq * Lk * attn_bytes)  # attn-weights tile
        scratch = 6 * tq * Lk * 4 + 2 * tq * d_model * 4  # f32 softmax temps
        if resident + scratch <= budget:
            return tq
    return cands[-1]


# ----------------------------------------------------------------------------
# Kernel 1: tiled dense layer   y = x @ W + b
#   x: (N, d_in)   W: (d_in, d_out) pre-transposed, bf16   b: (1, d_out) f32
# ----------------------------------------------------------------------------
def _linear_kernel(x_ref, w_ref, b_ref, o_ref, acc_ref):
    @pl.when(pl.program_id(2) == 0)
    def _():
        acc_ref[...] = jnp.zeros_like(acc_ref)

    # bf16 x bf16 -> f32 accumulation on the MXU.
    acc_ref[...] += jnp.dot(x_ref[...].astype(w_ref.dtype), w_ref[...],
                            preferred_element_type=jnp.float32)

    @pl.when(pl.program_id(2) == pl.num_programs(2) - 1)
    def _():
        o_ref[...] = (acc_ref[...] + b_ref[...].astype(jnp.float32)
                      ).astype(o_ref.dtype)


def linear(x, w_t, b_row, out_dtype=None):
    """x: (N, d_in), w_t: (d_in, d_out) [bf16], b_row: (1, d_out) -> (N, d_out)."""
    n, d_in = x.shape
    d_out = w_t.shape[1]
    out_dtype = out_dtype or x.dtype
    tm = _pick_tile(n, (512, 256, 128, 64, 32, 16, 8))
    tn = _pick_tile(d_out, (512, 256, 128))
    tk = _pick_tile(d_in, (512, 256, 128))
    grid = (n // tm, d_out // tn, d_in // tk)
    return pl.pallas_call(
        _linear_kernel,
        out_shape=jax.ShapeDtypeStruct((n, d_out), out_dtype),
        grid_spec=pltpu.PrefetchScalarGridSpec(
            num_scalar_prefetch=0,
            grid=grid,
            in_specs=[
                pl.BlockSpec((tm, tk), lambda i, j, k: (i, k)),
                pl.BlockSpec((tk, tn), lambda i, j, k: (k, j)),
                pl.BlockSpec((1, tn), lambda i, j, k: (0, j)),
            ],
            out_specs=pl.BlockSpec((tm, tn), lambda i, j, k: (i, j)),
            scratch_shapes=[pltpu.VMEM((tm, tn), jnp.float32)],
        ),
        compiler_params=pltpu.CompilerParams(
            dimension_semantics=("parallel", "parallel", "arbitrary"),
            vmem_limit_bytes=_vmem_budget_bytes(),
        ),
    )(x, w_t, b_row)


# ----------------------------------------------------------------------------
# Kernel 2: fused attention core.
#   Grid point = (batch b, query tile qi); all heads handled per step.
#   q: (1, tq, d_model)  k, v: (1, Lk, d_model)   [bf16]
#   outputs: context tile (1, tq, d_model) [lane-dense single store],
#            attn (1, H, tq, Lk) in query dtype.
# ----------------------------------------------------------------------------
def _attn_kernel(q_ref, k_ref, v_ref, ctx_ref, attn_ref, *, nhead, head_dim):
    ctx_heads = []
    for h in range(nhead):                       # static unroll; small H here
        sl = pl.ds(h * head_dim, head_dim)
        q_h = q_ref[0, :, sl]                    # (tq, hd) bf16, scale folded in
        k_h = k_ref[0, :, sl]                    # (Lk, hd) bf16
        v_h = v_ref[0, :, sl]                    # (Lk, hd) bf16

        # scores = Q_h @ K_h^T without materializing K^T (contract last dims);
        # bf16 operands, f32 accumulation (PyTorch: QK.float()).
        scores = lax.dot_general(
            q_h, k_h,
            dimension_numbers=(((1,), (1,)), ((), ())),
            preferred_element_type=jnp.float32,
        )                                        # (tq, Lk) f32

        # numerically-stable f32 softmax; denominator reciprocal on the EUP.
        m = jnp.max(scores, axis=-1, keepdims=True)
        e = jnp.exp(scores - m)
        s = jnp.sum(e, axis=-1, keepdims=True)
        attn = e * pl.reciprocal(s, approx=True)

        attn_ref[0, h] = attn.astype(attn_ref.dtype)

        # dropout(p) at inference == identity
        ctx_heads.append(jnp.dot(attn.astype(v_h.dtype), v_h,
                                 preferred_element_type=jnp.float32))  # (tq, hd)

    # One lane-dense (tq, d_model) store instead of per-head partial stores.
    ctx_ref[0] = jnp.concatenate(ctx_heads, axis=-1).astype(ctx_ref.dtype)


def attention_core(Q, K, V, nhead, attn_dtype=None):
    """Q: (B, Lq, d_model), K/V: (B, Lk, d_model) ->
       (context (B, Lq, d_model), attn (B, H, Lq, Lk))."""
    B, Lq, d_model = Q.shape
    Lk = K.shape[1]
    assert d_model % nhead == 0
    head_dim = d_model // nhead
    attn_dtype = attn_dtype or Q.dtype

    budget = _vmem_budget_bytes()
    tq = _attn_query_tile(Lq, Lk, d_model, nhead,
                          jnp.dtype(Q.dtype).itemsize,
                          jnp.dtype(attn_dtype).itemsize, budget)

    kern = functools.partial(_attn_kernel, nhead=nhead, head_dim=head_dim)
    return pl.pallas_call(
        kern,
        out_shape=(
            jax.ShapeDtypeStruct((B, Lq, d_model), Q.dtype),
            jax.ShapeDtypeStruct((B, nhead, Lq, Lk), attn_dtype),
        ),
        grid_spec=pltpu.PrefetchScalarGridSpec(
            num_scalar_prefetch=0,
            grid=(B, Lq // tq),
            in_specs=[
                pl.BlockSpec((1, tq, d_model), lambda b, qi: (b, qi, 0)),
                pl.BlockSpec((1, Lk, d_model), lambda b, qi: (b, 0, 0)),
                pl.BlockSpec((1, Lk, d_model), lambda b, qi: (b, 0, 0)),
            ],
            out_specs=[
                pl.BlockSpec((1, tq, d_model), lambda b, qi: (b, qi, 0)),
                pl.BlockSpec((1, nhead, tq, Lk), lambda b, qi: (b, 0, qi, 0)),
            ],
        ),
        compiler_params=pltpu.CompilerParams(
            dimension_semantics=("parallel", "parallel"),
            vmem_limit_bytes=budget,
        ),
    )(Q, K, V)


# ----------------------------------------------------------------------------
# Parameters (PyTorch nn.Linear layout) and one-time kernel-layout preparation.
# ----------------------------------------------------------------------------
def init_params(key, nhead, d_model, dtype=jnp.float32):
    assert d_model % nhead == 0
    ks = jax.random.split(key, 8)
    bound = 1.0 / math.sqrt(d_model)

    def lin(kw, kb):
        w = jax.random.uniform(kw, (d_model, d_model), dtype, -bound, bound)
        b = jax.random.uniform(kb, (d_model,), dtype, -bound, bound)
        return w, b

    return {"Q": lin(ks[0], ks[1]), "K": lin(ks[2], ks[3]),
            "V": lin(ks[4], ks[5]), "final": lin(ks[6], ks[7])}


def prepare_params(params, nhead, compute_dtype=jnp.bfloat16):
    """One-time conversion for the kernels:
       - pre-transpose weights to (d_in, d_out) and cast to the MXU compute
         dtype (bf16 by default)
       - fold 1/sqrt(head_dim) into the Q projection (weight AND bias)
       - biases kept in f32 (added in the f32 accumulator), shaped (1, d_out)
       - a fused (d_model, 3*d_model) QKV weight for the self-attention path."""
    d_model = params["Q"][0].shape[0]
    scale = 1.0 / math.sqrt(d_model // nhead)

    def w_t(wb, s=1.0):
        return (wb[0].T * s).astype(compute_dtype)

    def b_row(wb, s=1.0):
        return (wb[1] * s).reshape(1, -1).astype(jnp.float32)

    wq, bq = w_t(params["Q"], scale), b_row(params["Q"], scale)
    wk, bk = w_t(params["K"]), b_row(params["K"])
    wv, bv = w_t(params["V"]), b_row(params["V"])
    wf, bff = w_t(params["final"]), b_row(params["final"])
    return {
        "Q": (wq, bq), "K": (wk, bk), "V": (wv, bv), "final": (wf, bff),
        "qkv": (jnp.concatenate([wq, wk, wv], axis=1),
                jnp.concatenate([bq, bk, bv], axis=1)),
    }


def multi_headed_attention(prepared, query, key, value, nhead):
    """query/key/value: (B, L, d_model). Returns (output, attns) like the module."""
    B, Lq, d_model = query.shape
    Lk = key.shape[1]
    proj_dtype = prepared["qkv"][0].dtype     # bf16 compute dtype

    if (query is key) and (key is value):
        # Self-attention fast path: one fused QKV projection -> x streamed once.
        wqkv, bqkv = prepared["qkv"]
        qkv = linear(query.reshape(B * Lq, d_model), wqkv, bqkv,
                     out_dtype=proj_dtype).reshape(B, Lq, 3 * d_model)
        # TODO(synk): when d_model % 128 == 0 these slices could instead be taken
        #             by the attention BlockSpecs (block index on the last axis),
        #             skipping the slice copies entirely.
        Q = qkv[:, :, :d_model]
        K = qkv[:, :, d_model:2 * d_model]
        V = qkv[:, :, 2 * d_model:]
    else:
        wq, bq = prepared["Q"]
        wk, bk = prepared["K"]
        wv, bv = prepared["V"]
        Q = linear(query.reshape(B * Lq, d_model), wq, bq,
                   out_dtype=proj_dtype).reshape(B, Lq, d_model)
        K = linear(key.reshape(B * Lk, d_model), wk, bk,
                   out_dtype=proj_dtype).reshape(B, Lk, d_model)
        V = linear(value.reshape(B * Lk, d_model), wv, bv,
                   out_dtype=proj_dtype).reshape(B, Lk, d_model)

    # Attention consumes/produces flat (B, L, d_model): no head transposes in HBM.
    # attn weights are emitted in query.dtype for module parity (bf16 would halve
    # the dominant HBM writeback if the caller allows it).
    context, attns = attention_core(Q, K, V, nhead, attn_dtype=query.dtype)

    wf, bf = prepared["final"]
    output = linear(context.reshape(B * Lq, d_model), wf, bf,
                    out_dtype=query.dtype).reshape(B, Lq, d_model)
    return output, attns


# ----------------------------------------------------------------------------
def _reference(params, query, key, value, nhead):
    """Pure-JAX f32 reference following the PyTorch module exactly."""
    B, Lq, d_model = query.shape
    hd = d_model // nhead

    def lin(x, wb):
        w, b = wb
        return x @ w.T + b

    def shape(x):
        return x.reshape(B, -1, nhead, hd).transpose(0, 2, 1, 3)

    Q = shape(lin(query, params["Q"])) / math.sqrt(hd)
    K = shape(lin(key, params["K"]))
    V = shape(lin(value, params["V"]))
    scores = jnp.einsum("bhqd,bhkd->bhqk", Q, K).astype(jnp.float32)
    attn = jax.nn.softmax(scores, axis=-1).astype(query.dtype)
    ctx = jnp.einsum("bhqk,bhkd->bhqd", attn, V)
    ctx = ctx.transpose(0, 2, 1, 3).reshape(B, Lq, d_model)
    out = lin(ctx, params["final"])
    return out, attn


if __name__ == "__main__":
    nhead = 4
    d_model = 32
    B = 2
    seq = 8

    root = jax.random.PRNGKey(0)
    kp, kq, kk, kv = jax.random.split(root, 4)
    params = init_params(kp, nhead, d_model)
    prepped = prepare_params(params, nhead)          # bf16 MXU weights

    x = jax.random.normal(kq, (B, seq, d_model), jnp.float32)
    key_t = jax.random.normal(kk, (B, seq, d_model), jnp.float32)
    val_t = jax.random.normal(kv, (B, seq, d_model), jnp.float32)

    # Self-attention (fused QKV projection path).
    out_sa, attn_sa = multi_headed_attention(prepped, x, x, x, nhead)
    # Cross-attention (separate projection path).
    out_ca, attn_ca = multi_headed_attention(prepped, x, key_t, val_t, nhead)
    jax.block_until_ready((out_sa, attn_sa, out_ca, attn_ca))

    ref_out_sa, ref_attn_sa = _reference(params, x, x, x, nhead)
    ref_out_ca, ref_attn_ca = _reference(params, x, key_t, val_t, nhead)

    assert out_sa.shape == (B, seq, d_model)
    assert attn_sa.shape == (B, nhead, seq, seq)
    assert out_ca.shape == (B, seq, d_model)
    assert attn_ca.shape == (B, nhead, seq, seq)

    # Tolerances account for bf16 MXU operands (f32 accumulation) and the EUP
    # approx reciprocal in softmax vs. the pure-f32 reference.
    tol = dict(atol=2e-2, rtol=2e-2)
    assert jnp.allclose(out_sa, ref_out_sa, **tol), \
        float(jnp.max(jnp.abs(out_sa - ref_out_sa)))
    assert jnp.allclose(attn_sa, ref_attn_sa, **tol), \
        float(jnp.max(jnp.abs(attn_sa - ref_attn_sa)))
    assert jnp.allclose(out_ca, ref_out_ca, **tol), \
        float(jnp.max(jnp.abs(out_ca - ref_out_ca)))
    assert jnp.allclose(attn_ca, ref_attn_ca, **tol), \
        float(jnp.max(jnp.abs(attn_ca - ref_attn_ca)))

    print("KERNEL_OK")
</pallas_src>

<mosaic_0001>
module attributes {stable_mosaic.version = 11 : i64} {
  func.func @_linear_kernel(%arg0: i32, %arg1: i32, %arg2: i32, %arg3: memref<16x32xf32, #tpu.memory_space<vmem>>, %arg4: memref<32x96xbf16, #tpu.memory_space<vmem>>, %arg5: memref<1x96xf32, #tpu.memory_space<vmem>>, %arg6: memref<16x96xbf16, #tpu.memory_space<vmem>>, %arg7: memref<16x96xf32, #tpu.memory_space<vmem>>) attributes {dimension_semantics = [#tpu.dimension_semantics<parallel>, #tpu.dimension_semantics<parallel>, #tpu.dimension_semantics<arbitrary>], iteration_bounds = array<i64: 1, 1, 1>, scalar_prefetch = 0 : i64, scratch_operands = 1 : i64, tpu.core_type = #tpu.core_type<tc>, window_params = [{transform_indices = @transform_0, window_bounds = array<i64: 16, 32>}, {transform_indices = @transform_1, window_bounds = array<i64: 32, 96>}, {transform_indices = @transform_2, window_bounds = array<i64: 1, 96>}, {transform_indices = @transform_3, window_bounds = array<i64: 16, 96>}]} {
    %c0_i32 = arith.constant 0 : i32
    %0 = arith.cmpi eq, %arg2, %c0_i32 : i32
    %1 = arith.extui %0 : i1 to i32
    %c0_i32_0 = arith.constant 0 : i32
    %2 = arith.cmpi ne, %1, %c0_i32_0 : i32
    scf.if %2 {
      %cst_10 = arith.constant 0.000000e+00 : f32
      %13 = vector.broadcast %cst_10 : f32 to vector<16x96xf32>
      %c0_11 = arith.constant 0 : index
      %c0_12 = arith.constant 0 : index
      %14 = vector.load %arg7[%c0_11, %c0_12] : memref<16x96xf32, #tpu.memory_space<vmem>>, vector<16x96xf32>
      tpu.vector_store %arg7[%c0_11, %c0_12], %13 {strides = array<i32>} : memref<16x96xf32, #tpu.memory_space<vmem>>, vector<16x96xf32>,
    } else {
    }
    %c0 = arith.constant 0 : index
    %c0_1 = arith.constant 0 : index
    %3 = vector.load %arg7[%c0, %c0_1] : memref<16x96xf32, #tpu.memory_space<vmem>>, vector<16x96xf32>
    %c0_2 = arith.constant 0 : index
    %c0_3 = arith.constant 0 : index
    %4 = vector.load %arg3[%c0_2, %c0_3] : memref<16x32xf32, #tpu.memory_space<vmem>>, vector<16x32xf32>
    %5 = arith.truncf %4 : vector<16x32xf32> to vector<16x32xbf16>
    %c0_4 = arith.constant 0 : index
    %c0_5 = arith.constant 0 : index
    %6 = vector.load %arg4[%c0_4, %c0_5] : memref<32x96xbf16, #tpu.memory_space<vmem>>, vector<32x96xbf16>
    %cst = arith.constant dense<0.000000e+00> : vector<16x96xf32>
    %7 = tpu.matmul %5, %6, %cst {dimension_numbers = #tpu.dot_dimension_numbers<[1], [0], [0], [1], [0, 0, 1, 1], [], []>} : vector<16x32xbf16>, vector<32x96xbf16>, vector<16x96xf32> -> vector<16x96xf32>
    %8 = arith.addf %3, %7 : vector<16x96xf32>
    %c0_6 = arith.constant 0 : index
    %c0_7 = arith.constant 0 : index
    %9 = vector.load %arg7[%c0_6, %c0_7] : memref<16x96xf32, #tpu.memory_space<vmem>>, vector<16x96xf32>
    tpu.vector_store %arg7[%c0_6, %c0_7], %8 {strides = array<i32>} : memref<16x96xf32, #tpu.memory_space<vmem>>, vector<16x96xf32>,
    %c0_i32_8 = arith.constant 0 : i32
    %10 = arith.cmpi eq, %arg2, %c0_i32_8 : i32
    %11 = arith.extui %10 : i1 to i32
    %c0_i32_9 = arith.constant 0 : i32
    %12 = arith.cmpi ne, %11, %c0_i32_9 : i32
    scf.if %12 {
      %c0_10 = arith.constant 0 : index
      %c0_11 = arith.constant 0 : index
      %13 = vector.load %arg7[%c0_10, %c0_11] : memref<16x96xf32, #tpu.memory_space<vmem>>, vector<16x96xf32>
      %c0_12 = arith.constant 0 : index
      %c0_13 = arith.constant 0 : index
      %14 = vector.load %arg5[%c0_12, %c0_13] : memref<1x96xf32, #tpu.memory_space<vmem>>, vector<1x96xf32>
      %15 = vector.broadcast %14 : vector<1x96xf32> to vector<16x96xf32>
      %16 = arith.addf %13, %15 : vector<16x96xf32>
      %17 = arith.truncf %16 : vector<16x96xf32> to vector<16x96xbf16>
      %c0_14 = arith.constant 0 : index
      %c0_15 = arith.constant 0 : index
      %18 = vector.load %arg6[%c0_14, %c0_15] : memref<16x96xbf16, #tpu.memory_space<vmem>>, vector<16x96xbf16>
      tpu.vector_store %arg6[%c0_14, %c0_15], %17 {strides = array<i32>} : memref<16x96xbf16, #tpu.memory_space<vmem>>, vector<16x96xbf16>,
    } else {
    }
    return
  }
  func.func @transform_0(%arg0: i32, %arg1: i32, %arg2: i32) -> (i32, i32) {
    %c0_i32 = arith.constant 0 : i32
    return %arg0, %arg2 : i32, i32
  }
  func.func @transform_1(%arg0: i32, %arg1: i32, %arg2: i32) -> (i32, i32) {
    %c0_i32 = arith.constant 0 : i32
    return %arg2, %arg1 : i32, i32
  }
  func.func @transform_2(%arg0: i32, %arg1: i32, %arg2: i32) -> (i32, i32) {
    %c0_i32 = arith.constant 0 : i32
    %c0_i32_0 = arith.constant 0 : i32
    return %c0_i32, %arg1 : i32, i32
  }
  func.func @transform_3(%arg0: i32, %arg1: i32, %arg2: i32) -> (i32, i32) {
    %c0_i32 = arith.constant 0 : i32
    return %arg0, %arg1 : i32, i32
  }
}

</mosaic_0001>

<llo_original>
// kernel: tpu_custom_call.1
$region0: #{tpu_custom_call.1}
  #allocation0 [shape = 'u32[]', space=smem, size = 0x4, offset = 0x4, fixed_abs, tag = 'smem constant byte address 0x4 - core index']
  #allocation1 [shape = 'u32[144,128]{1,0:T(1,128)}', space=vmem, size = 0x12000, scoped, tag = 'internal scratch']
  #allocation2 [shape = 'f32[16,96]{1,0:T(8,128)}', space=vmem, size = 0x2000, scoped, tag = 'scratch operand']
  %s0 = inlined_call_operand.hbm [shape: f32[16,32], index: 0, kind: input, shape index: {}]
  %s1 = inlined_call_operand.hbm [shape: bf16[32,96], index: 1, kind: input, shape index: {}]
  %s2 = inlined_call_operand.vmem [shape: f32[1,96], index: 2, kind: input, shape index: {}]
  %s3 = inlined_call_operand.hbm [shape: bf16[16,96], index: 3, kind: output, shape index: {}]
  %s4 = sld [smem:[#allocation0]]
  $region38: #{tpu_custom_call.1} parent=0
    _
  %s6 = ssub.s32 1, %s4
  %s7 = scalar_select 0, %s6, %s4
  $region1: #{tpu_custom_call.1} parent=0
    #allocation3 [shape = 'u8[8192]{0}', space=vmem, size = 0x2000, scoped, tag = 'input window, operand 0, single buffered']
    #allocation4 [shape = 's32[1]{0}', space=sflag, size = 0x4, scoped, tag = 'scoped memory for tpu_custom_call.1']
    #allocation5 [shape = 's32[1]{0}', space=sflag, size = 0x4, scoped, tag = 'scoped memory for tpu_custom_call.1']
    #allocation6 [shape = 'u8[8192]{0}', space=vmem, size = 0x2000, scoped, tag = 'input window, operand 1, single buffered']
    #allocation7 [shape = 's32[1]{0}', space=sflag, size = 0x4, scoped, tag = 'scoped memory for tpu_custom_call.1']
    #allocation8 [shape = 'u8[4096]{0}', space=vmem, size = 0x1000, scoped, tag = 'output window, operand 0, single buffered']
    %8 = vsyncpa [#allocation4], 0
    %9 = vsyncpa [#allocation7], 0
    %10 = vsyncpa [#allocation5], 0
    // Predicated region
    $region2: #{tpu_custom_call.1} parent=1 // pred_check
      _
    $region3: #{tpu_custom_call.1} parent=1 // pred_check_branch
      %12 = sbr.rel (0) target = $region5
    $region4: #{tpu_custom_call.1} parent=1 // pred_region
      %s14 = ssub.s32 256, 256
      %15 = vsyncadd [#allocation4], %s14
      %s16 = sshll.u32 [#allocation3], 4
      %s17 = int_to_ptr.vmem [resolvable:$true] %s16
      %22 = dma.hbm_to_vmem [thread:$0]  %s0, 256, %s17, [#allocation4], 128, 128, 8
    $region5: #{tpu_custom_call.1} parent=1 // pred_fallthru
      _
    // Predicated region
    $region6: #{tpu_custom_call.1} parent=1 // pred_check
      _
    $region7: #{tpu_custom_call.1} parent=1 // pred_check_branch
      %24 = sbr.rel (0) target = $region9
    $region8: #{tpu_custom_call.1} parent=1 // pred_region
      %s26 = ssub.s32 256, 256
      %27 = vsyncadd [#allocation7], %s26
      %s28 = sshll.u32 [#allocation6], 4
      %s29 = int_to_ptr.vmem [resolvable:$true] %s28
      %34 = dma.hbm_to_vmem [thread:$0]  %s1, 256, %s29, [#allocation7], 64, 64, 4
    $region9: #{tpu_custom_call.1} parent=1 // pred_fallthru
      _
    // Predicated region
    $region10: #{tpu_custom_call.1} parent=1 // pred_check
      _
    $region11: #{tpu_custom_call.1} parent=1 // pred_check_branch
      %36 = sbr.rel (0) target = $region13
    $region12: #{tpu_custom_call.1} parent=1 // pred_region
      _
    $region13: #{tpu_custom_call.1} parent=1 // pred_fallthru
      _
    // Predicated region
    $region14: #{tpu_custom_call.1} parent=1 // pred_check
      _
    $region15: #{tpu_custom_call.1} parent=1 // pred_check_branch
      %38 = sbr.rel (0) target = $region17
    $region16: #{tpu_custom_call.1} parent=1 // pred_region
      %39 = dma.done [#allocation4], 256
    $region17: #{tpu_custom_call.1} parent=1 // pred_fallthru
      _
    // Predicated region
    $region18: #{tpu_custom_call.1} parent=1 // pred_check
      _
    $region19: #{tpu_custom_call.1} parent=1 // pred_check_branch
      %41 = sbr.rel (0) target = $region21
    $region20: #{tpu_custom_call.1} parent=1 // pred_region
      %42 = dma.done [#allocation7], 256
    $region21: #{tpu_custom_call.1} parent=1 // pred_fallthru
      _
    %p44 = scmp.eq.s32.totalorder 0, 0
    // Predicated region
    $region22: #{tpu_custom_call.1} parent=1 // pred_check
      %p45 = pneg %p44
    $region23: #{tpu_custom_call.1} parent=1 // pred_check_branch
      %47 = sbr.rel (%p45) target = $region25
    $region24: #{tpu_custom_call.1} parent=1 // pred_region
      %vm48 = vcmask 785408
      %49 = vst.msk [vmem:[#allocation2] sm:$0xff] %vm48, 0.0
      %50 = vst.msk [vmem:[#allocation2 + $0x8] sm:$0xff] %vm48, 0.0
    $region25: #{tpu_custom_call.1} parent=1 // pred_fallthru
      _
    %v51 = vld [vmem:[#allocation2] sm:$0xff]
    %v52 = vld [vmem:[#allocation2 + $0x8] sm:$0xff]
    %v53 = vld [vmem:[#allocation3] sm:$0xff]
    %v54 = vld [vmem:[#allocation3 + $0x8] sm:$0xff]
    %v55 = vpack.c.bf16 %v54, %v53
    %v56 = vld [vmem:[#allocation6] sm:$0xf]
    %v57 = vld [vmem:[#allocation6 + $0x4] sm:$0xf]
    %v58 = vld [vmem:[#allocation6 + $0x8] sm:$0xf]
    %v59 = vld [vmem:[#allocation6 + $0xc] sm:$0xf]
    %v64 = vunpack.c.l.b16 %v56
    %v65 = vunpack.c.l.b16 %v57
    %v66 = vunpack.c.l.b16 %v58
    %v67 = vunpack.c.l.b16 %v59
    %v68 = vpack.c.b16 %v65, %v64
    %v69 = vpack.c.b16 %v67, %v66
    %vm72 = vcmask 261120
    %v74 = vsel %vm72, %v55, 0
    %76 = vmatprep.subr.bf16.mxu0 0
    %77 = vmatpush1.bf16.msra.mxu0 0
    %78 = vmatprep.subr.bf16.mxu0 0
    %79 = vmatpush1.bf16.msra.mxu0 0
    %80 = vmatprep.subr.bf16.mxu0 0
    %81 = vmatpush1.bf16.msra.mxu0 0
    %82 = vmatprep.subr.bf16.mxu0 0
    %83 = vmatpush1.bf16.msra.mxu0 0
    %84 = vmatprep.subr.bf16.mxu0 0
    %85 = vmatpush1.bf16.msra.mxu0 0
    %86 = vmatprep.subr.bf16.mxu0 0
    %87 = vmatpush1.bf16.msra.mxu0 0
    %88 = vmatprep.subr.bf16.mxu0 0
    %89 = vmatpush1.bf16.msra.mxu0 %v69
    %90 = vmatprep.subr.bf16.mxu0 0
    %91 = vmatpush1.bf16.msra.mxu0 %v68
    %92 = vmatprep.subr.bf16.mxu0 0
    %93 = vmatpush2.bf16.msra.mxu0 0
    %94 = vmatprep.subr.bf16.mxu0 0
    %95 = vmatpush2.bf16.msra.mxu0 0
    %96 = vmatprep.subr.bf16.mxu0 0
    %97 = vmatpush2.bf16.msra.mxu0 0
    %98 = vmatprep.subr.bf16.mxu0 0
    %99 = vmatpush2.bf16.msra.mxu0 0
    %100 = vmatprep.subr.bf16.mxu0 0
    %101 = vmatpush2.bf16.msra.mxu0 0
    %102 = vmatprep.subr.bf16.mxu0 0
    %103 = vmatpush2.bf16.msra.mxu0 0
    %104 = vmatprep.subr.bf16.mxu0 0
    %105 = vmatpush2.bf16.msra.mxu0 0
    %106 = vmatprep.subr.bf16.mxu0 0
    %107 = vmatpush2.bf16.msra.mxu0 0
    %108 = vmatprep.mubr.bf16.mxu0 0
    %109 = vmatmul.mubr.bf16.gmra.mxu0 %v74
    %v110 = vpop.f32.mrf.mxu0
    %v111 = vadd.f32 0.0, %v110
    %v112 = vpop.f32.mrf.mxu0
    %v113 = vpop.f32.mrf.mxu0
    %v114 = vadd.f32 0.0, %v113
    %v115 = vpop.f32.mrf.mxu0
    %116 = vdwg.mxu0
    %v117 = vadd.f32 %v51, %v111
    %v118 = vadd.f32 %v52, %v114
    %vm119 = vcmask 785408
    %120 = vst.msk [vmem:[#allocation2] sm:$0xff] %vm119, %v117
    %121 = vst.msk [vmem:[#allocation2 + $0x8] sm:$0xff] %vm119, %v118
    // Predicated region
    $region26: #{tpu_custom_call.1} parent=1 // pred_check
      %p122 = pneg %p44
    $region27: #{tpu_custom_call.1} parent=1 // pred_check_branch
      %124 = sbr.rel (%p122) target = $region29
    $region28: #{tpu_custom_call.1} parent=1 // pred_region
      %v125 = vld [vmem:[#allocation2] sm:$0xff]
      %v126 = vld [vmem:[#allocation2 + $0x8] sm:$0xff]
      %v127 = vld [vmem:[%s2] sm:$0x1]
      %v129 = vlaneseq
      %v130 = vshrl.u32 %v129, 7
      %v131 = vsub.s32 0, %v130
      %v132 = vrot.slane %v127, %v131
      %v134 = vadd.f32 %v125, %v132
      %v135 = vadd.f32 %v126, %v132
      %v136 = vpack.c.bf16 %v135, %v134
      %v138 = vunpack.c.l.b16 %v136
      %v139 = vunpack.c.h.b16 %v136
      %v140 = vpack.c.b16 %v138, %v138
      %v141 = vpack.c.b16 %v139, %v139
      %vm144 = vcmask 781312
      %145 = vst.msk [vmem:[#allocation8] sm:$0xf] %vm144, %v140
      %146 = vst.msk [vmem:[#allocation8 + $0x4] sm:$0xf] %vm144, %v141
    $region29: #{tpu_custom_call.1} parent=1 // pred_fallthru
      _
    // Predicated region
    $region30: #{tpu_custom_call.1} parent=1 // pred_check
      _
    $region31: #{tpu_custom_call.1} parent=1 // pred_check_branch
      %148 = sbr.rel (0) target = $region33
    $region32: #{tpu_custom_call.1} parent=1 // pred_region
      %s150 = ssub.s32 128, 128
      %151 = vsyncadd [#allocation5], %s150
      %s152 = sshll.u32 [#allocation8], 4
      %s153 = int_to_ptr.vmem [resolvable:$true] %s152
      %158 = dma.vmem_to_hbm [thread:$0]  %s153, 128, %s3, [#allocation5], 64, 64, 4
    $region33: #{tpu_custom_call.1} parent=1 // pred_fallthru
      _
    // Predicated region
    $region34: #{tpu_custom_call.1} parent=1 // pred_check
      _
    $region35: #{tpu_custom_call.1} parent=1 // pred_check_branch
      %160 = sbr.rel (0) target = $region37
    $region36: #{tpu_custom_call.1} parent=1 // pred_region
      %161 = dma.done [#allocation5], 128
    $region37: #{tpu_custom_call.1} parent=1 // pred_fallthru
      _
    %162 = vsyncpa [#allocation4], 1
    %163 = vsyncpa [#allocation7], 1
    %164 = vsyncpa [#allocation5], 1

</llo_original>
